<compile_context>
chip_gen: v7x
topology: tpu7x:2x2x1
jax: 0.10.0
libtpu: 0.0.40
codegen_flags: <defaults>
</compile_context>

<pallas_src>
import jax
import jax.numpy as jnp
from jax.experimental import pallas as pl
from jax.experimental.pallas import tpu as pltpu

IN_FEATURES = 8
OUT_FEATURES = 5
_LANE = 128

_SMALL_BATCH_MAX = 256   # gridless single-invocation path below this
_BATCH_TILE = 512        # batch tile for the gridded path (multiple of 8)


def prepare_params(weight, bias):
    """One-time parameter transform (call once at model init).

    weight: (5, 8) f32 (torch Linear layout); bias: (5,) f32.
    Returns lane-dense padded params with the constant +3 folded into the bias.
    """
    w_p = jnp.zeros((IN_FEATURES, _LANE), jnp.float32)
    w_p = w_p.at[:, :OUT_FEATURES].set(weight.T.astype(jnp.float32))
    b_p = jnp.zeros((1, _LANE), jnp.float32)
    b_p = b_p.at[0, :OUT_FEATURES].set(bias.astype(jnp.float32) + 3.0)
    return w_p, b_p


def _linear_relu6_kernel(x_ref, w_ref, b_ref, o_ref):
    # One MXU pass on a lane-dense (*,128) RHS, fused bias-add + clamp on the
    # VPU, then a narrow (5-lane) store straight into the un-padded output.
    acc = jnp.dot(x_ref[...], w_ref[...], preferred_element_type=jnp.float32)
    y = jnp.clip(acc + b_ref[...], 0.0, 6.0)
    o_ref[...] = y[:, :OUT_FEATURES].astype(o_ref.dtype)


def model_forward(x, w_p, b_p):
    """relu6(x @ weight.T + bias + 3) using the pre-padded params from
    `prepare_params`.  x: (B, 8) f32 -> (B, 5) f32."""
    B = x.shape[0]
    x = x.astype(jnp.float32)

    if B <= _SMALL_BATCH_MAX:
        # Gridless path: whole arrays resident in VMEM, no pipeline machinery.
        return pl.pallas_call(
            _linear_relu6_kernel,
            out_shape=jax.ShapeDtypeStruct((B, OUT_FEATURES), jnp.float32),
            in_specs=[
                pl.BlockSpec(memory_space=pltpu.MemorySpace.VMEM),
                pl.BlockSpec(memory_space=pltpu.MemorySpace.VMEM),
                pl.BlockSpec(memory_space=pltpu.MemorySpace.VMEM),
            ],
            out_specs=pl.BlockSpec(memory_space=pltpu.MemorySpace.VMEM),
        )(x, w_p, b_p)

    # Batch-tiled path for large B: big tiles (per-step overhead amortized),
    # W / bias resident across the grid, batch axis parallel (2 TCs on v7x).
    # TODO(synk): for very large mem-bound B, a bf16 x/W MXU input and a
    # batch-on-lanes output layout would further cut HBM traffic.
    tb = _BATCH_TILE
    grid = (pl.cdiv(B, tb),)
    return pl.pallas_call(
        _linear_relu6_kernel,
        out_shape=jax.ShapeDtypeStruct((B, OUT_FEATURES), jnp.float32),
        grid_spec=pltpu.PrefetchScalarGridSpec(
            num_scalar_prefetch=0,
            grid=grid,
            in_specs=[
                pl.BlockSpec((tb, IN_FEATURES), lambda i: (i, 0)),
                pl.BlockSpec((IN_FEATURES, _LANE), lambda i: (0, 0)),
                pl.BlockSpec((1, _LANE), lambda i: (0, 0)),
            ],
            out_specs=pl.BlockSpec((tb, OUT_FEATURES), lambda i: (i, 0)),
        ),
        compiler_params=pltpu.CompilerParams(
            dimension_semantics=("parallel",)),
    )(x, w_p, b_p)


if __name__ == "__main__":
    key = jax.random.PRNGKey(0)
    kx, kw, kb, kx2 = jax.random.split(key, 4)

    # torch.nn.Linear(8, 5)-shaped parameters and a (1, 8) input.
    x = jax.random.normal(kx, (1, IN_FEATURES), dtype=jnp.float32)
    weight = jax.random.normal(kw, (OUT_FEATURES, IN_FEATURES), dtype=jnp.float32) * 0.1
    bias = jax.random.normal(kb, (OUT_FEATURES,), dtype=jnp.float32) * 0.1

    # One-time parameter prep (hoisted out of the per-call path).
    w_p, b_p = prepare_params(weight, bias)

    # Small-batch (gridless) path -- the module's actual shape.
    out = model_forward(x, w_p, b_p)
    jax.block_until_ready(out)
    ref = jnp.clip(x @ weight.T + bias + 3.0, 0.0, 6.0)
    assert out.shape == (1, OUT_FEATURES), out.shape
    assert jnp.allclose(out, ref, atol=1e-5), (out, ref)

    # Quick check of the batch-tiled path (2 grid steps).
    xb = jax.random.normal(kx2, (1024, IN_FEATURES), dtype=jnp.float32)
    outb = model_forward(xb, w_p, b_p)
    jax.block_until_ready(outb)
    refb = jnp.clip(xb @ weight.T + bias + 3.0, 0.0, 6.0)
    assert outb.shape == (1024, OUT_FEATURES), outb.shape
    assert jnp.allclose(outb, refb, atol=1e-5)

    print("KERNEL_OK")
</pallas_src>

<mosaic_0001>
module attributes {stable_mosaic.version = 11 : i64} {
  func.func @_linear_relu6_kernel(%arg0: memref<1x8xf32, #tpu.memory_space<vmem>>, %arg1: memref<8x128xf32, #tpu.memory_space<vmem>>, %arg2: memref<1x128xf32, #tpu.memory_space<vmem>>, %arg3: memref<1x5xf32, #tpu.memory_space<vmem>>) attributes {dimension_semantics = [], scalar_prefetch = 0 : i64, scratch_operands = 0 : i64, tpu.core_type = #tpu.core_type<tc>} {
    %c0 = arith.constant 0 : index
    %c0_0 = arith.constant 0 : index
    %0 = vector.load %arg0[%c0, %c0_0] : memref<1x8xf32, #tpu.memory_space<vmem>>, vector<1x8xf32>
    %c0_1 = arith.constant 0 : index
    %c0_2 = arith.constant 0 : index
    %1 = vector.load %arg1[%c0_1, %c0_2] : memref<8x128xf32, #tpu.memory_space<vmem>>, vector<8x128xf32>
    %cst = arith.constant dense<0.000000e+00> : vector<1x128xf32>
    %2 = tpu.matmul %0, %1, %cst {dimension_numbers = #tpu.dot_dimension_numbers<[1], [0], [0], [1], [0, 0, 1, 1], [], []>} : vector<1x8xf32>, vector<8x128xf32>, vector<1x128xf32> -> vector<1x128xf32>
    %c0_3 = arith.constant 0 : index
    %c0_4 = arith.constant 0 : index
    %3 = vector.load %arg2[%c0_3, %c0_4] : memref<1x128xf32, #tpu.memory_space<vmem>>, vector<1x128xf32>
    %4 = arith.addf %2, %3 : vector<1x128xf32>
    %cst_5 = arith.constant 0.000000e+00 : f32
    %cst_6 = arith.constant 6.000000e+00 : f32
    %5 = vector.broadcast %cst_5 : f32 to vector<1x128xf32>
    %6 = arith.maximumf %5, %4 : vector<1x128xf32>
    %7 = vector.broadcast %cst_6 : f32 to vector<1x128xf32>
    %8 = arith.minimumf %7, %6 : vector<1x128xf32>
    %9 = vector.extract_strided_slice %8 {offsets = [0, 0], sizes = [1, 5], strides = [1, 1]} : vector<1x128xf32> to vector<1x5xf32>
    %c0_7 = arith.constant 0 : index
    %c0_8 = arith.constant 0 : index
    %10 = vector.load %arg3[%c0_7, %c0_8] : memref<1x5xf32, #tpu.memory_space<vmem>>, vector<1x5xf32>
    tpu.vector_store %arg3[%c0_7, %c0_8], %9 {strides = array<i32>} : memref<1x5xf32, #tpu.memory_space<vmem>>, vector<1x5xf32>,
    return
  }
}

</mosaic_0001>

<llo_original>
// kernel: tpu_custom_call.1
$region0: #{tpu_custom_call.1}
  #allocation0 [shape = 'u32[]', space=smem, size = 0x4, offset = 0x4, fixed_abs, tag = 'smem constant byte address 0x4 - core index']
  #allocation1 [shape = 'u32[144,128]{1,0:T(1,128)}', space=vmem, size = 0x12000, scoped, tag = 'internal scratch']
  %s0 = inlined_call_operand.hbm [shape: f32[1,8], index: 0, kind: input, shape index: {}]
  %s1 = inlined_call_operand.hbm [shape: f32[8,128], index: 1, kind: input, shape index: {}]
  %s2 = inlined_call_operand.vmem [shape: f32[1,128], index: 2, kind: input, shape index: {}]
  %s3 = inlined_call_operand.hbm [shape: f32[1,5], index: 3, kind: output, shape index: {}]
  %s4 = sld [smem:[#allocation0]]
  $region30: #{tpu_custom_call.1} parent=0
    _
  %s6 = ssub.s32 1, %s4
  %s7 = scalar_select 0, %s6, %s4
  $region1: #{tpu_custom_call.1} parent=0
    #allocation2 [shape = 'u8[512]{0}', space=vmem, size = 0x400, scoped, tag = 'input window, operand 0, single buffered']
    #allocation3 [shape = 's32[1]{0}', space=sflag, size = 0x4, scoped, tag = 'scoped memory for tpu_custom_call.1']
    #allocation4 [shape = 's32[1]{0}', space=sflag, size = 0x4, scoped, tag = 'scoped memory for tpu_custom_call.1']
    #allocation5 [shape = 'u8[4096]{0}', space=vmem, size = 0x1000, scoped, tag = 'input window, operand 1, single buffered']
    #allocation6 [shape = 's32[1]{0}', space=sflag, size = 0x4, scoped, tag = 'scoped memory for tpu_custom_call.1']
    #allocation7 [shape = 'u8[512]{0}', space=vmem, size = 0x400, scoped, tag = 'output window, operand 0, single buffered']
    %8 = vsyncpa [#allocation3], 0
    %9 = vsyncpa [#allocation6], 0
    %10 = vsyncpa [#allocation4], 0
    // Predicated region
    $region2: #{tpu_custom_call.1} parent=1 // pred_check
      _
    $region3: #{tpu_custom_call.1} parent=1 // pred_check_branch
      %12 = sbr.rel (0) target = $region5
    $region4: #{tpu_custom_call.1} parent=1 // pred_region
      %s14 = ssub.s32 16, 16
      %15 = vsyncadd [#allocation3], %s14
      %s17 = sshll.u32 [#allocation2], 4
      %s18 = int_to_ptr.vmem [resolvable:$true] %s17
      %20 = dma.hbm_to_vmem [thread:$0]  %s0, 16, %s18, [#allocation3]
    $region5: #{tpu_custom_call.1} parent=1 // pred_fallthru
      _
    // Predicated region
    $region6: #{tpu_custom_call.1} parent=1 // pred_check
      _
    $region7: #{tpu_custom_call.1} parent=1 // pred_check_branch
      %22 = sbr.rel (0) target = $region9
    $region8: #{tpu_custom_call.1} parent=1 // pred_region
      %s24 = ssub.s32 128, 128
      %25 = vsyncadd [#allocation6], %s24
      %s27 = sshll.u32 [#allocation5], 4
      %s28 = int_to_ptr.vmem [resolvable:$true] %s27
      %30 = dma.hbm_to_vmem [thread:$0]  %s1, 128, %s28, [#allocation6]
    $region9: #{tpu_custom_call.1} parent=1 // pred_fallthru
      _
    // Predicated region
    $region10: #{tpu_custom_call.1} parent=1 // pred_check
      _
    $region11: #{tpu_custom_call.1} parent=1 // pred_check_branch
      %32 = sbr.rel (0) target = $region13
    $region12: #{tpu_custom_call.1} parent=1 // pred_region
      _
    $region13: #{tpu_custom_call.1} parent=1 // pred_fallthru
      _
    // Predicated region
    $region14: #{tpu_custom_call.1} parent=1 // pred_check
      _
    $region15: #{tpu_custom_call.1} parent=1 // pred_check_branch
      %34 = sbr.rel (0) target = $region17
    $region16: #{tpu_custom_call.1} parent=1 // pred_region
      %35 = dma.done [#allocation3], 16
    $region17: #{tpu_custom_call.1} parent=1 // pred_fallthru
      _
    // Predicated region
    $region18: #{tpu_custom_call.1} parent=1 // pred_check
      _
    $region19: #{tpu_custom_call.1} parent=1 // pred_check_branch
      %37 = sbr.rel (0) target = $region21
    $region20: #{tpu_custom_call.1} parent=1 // pred_region
      %38 = dma.done [#allocation6], 128
    $region21: #{tpu_custom_call.1} parent=1 // pred_fallthru
      _
    %v39 = vld [vmem:[#allocation2] sm:$0x1]
    %v40 = vld [vmem:[#allocation5] sm:$0xff]
    %v41 = vld [vmem:[%s2] sm:$0x1]
    %vm42 = vcmask 64512
    %v44 = vsel %vm42, %v39, 0
    %46 = vmatprep.subr.mxu0 0.0
    %47 = vmatpush1.msra.mxu0 %v40
    %48 = vmatprep.subr.mxu0 0.0
    %49 = vmatpush1.msra.mxu0 0.0
    %50 = vmatprep.subr.mxu0 0.0
    %51 = vmatpush1.msra.mxu0 0.0
    %52 = vmatprep.subr.mxu0 0.0
    %53 = vmatpush1.msra.mxu0 0.0
    %54 = vmatprep.subr.mxu0 0.0
    %55 = vmatpush1.msra.mxu0 0.0
    %56 = vmatprep.subr.mxu0 0.0
    %57 = vmatpush1.msra.mxu0 0.0
    %58 = vmatprep.subr.mxu0 0.0
    %59 = vmatpush1.msra.mxu0 0.0
    %60 = vmatprep.subr.mxu0 0.0
    %61 = vmatpush1.msra.mxu0 0.0
    %62 = vmatprep.subr.mxu0 0.0
    %63 = vmatpush1.msra.mxu0 0.0
    %64 = vmatprep.subr.mxu0 0.0
    %65 = vmatpush1.msra.mxu0 0.0
    %66 = vmatprep.subr.mxu0 0.0
    %67 = vmatpush1.msra.mxu0 0.0
    %68 = vmatprep.subr.mxu0 0.0
    %69 = vmatpush1.msra.mxu0 0.0
    %70 = vmatprep.subr.mxu0 0.0
    %71 = vmatpush1.msra.mxu0 0.0
    %72 = vmatprep.subr.mxu0 0.0
    %73 = vmatpush1.msra.mxu0 0.0
    %74 = vmatprep.subr.mxu0 0.0
    %75 = vmatpush1.msra.mxu0 0.0
    %76 = vmatprep.subr.mxu0 0.0
    %77 = vmatpush1.msra.mxu0 0.0
    %78 = vmatprep.subr.mxu0 0.0
    %79 = vmatpush1.msra.mxu0 0.0
    %80 = vmatprep.subr.mxu0 0.0
    %81 = vmatpush1.msra.mxu0 0.0
    %82 = vmatprep.subr.mxu0 0.0
    %83 = vmatpush1.msra.mxu0 0.0
    %84 = vmatprep.subr.mxu0 0.0
    %85 = vmatpush1.msra.mxu0 0.0
    %86 = vmatprep.subr.mxu0 0.0
    %87 = vmatpush1.msra.mxu0 0.0
    %88 = vmatprep.subr.mxu0 0.0
    %89 = vmatpush1.msra.mxu0 0.0
    %90 = vmatprep.subr.mxu0 0.0
    %91 = vmatpush1.msra.mxu0 0.0
    %92 = vmatprep.subr.mxu0 0.0
    %93 = vmatpush1.msra.mxu0 0.0
    %94 = vmatprep.subr.mxu0 0.0
    %95 = vmatpush1.msra.mxu0 0.0
    %96 = vmatprep.subr.mxu0 0.0
    %97 = vmatpush1.msra.mxu0 0.0
    %98 = vmatprep.subr.mxu0 0.0
    %99 = vmatpush1.msra.mxu0 0.0
    %100 = vmatprep.subr.mxu0 0.0
    %101 = vmatpush1.msra.mxu0 0.0
    %102 = vmatprep.subr.mxu0 0.0
    %103 = vmatpush1.msra.mxu0 0.0
    %104 = vmatprep.subr.mxu0 0.0
    %105 = vmatpush1.msra.mxu0 0.0
    %106 = vmatprep.subr.mxu0 0.0
    %107 = vmatpush1.msra.mxu0 0.0
    %108 = vmatprep.subr.mxu0 0.0
    %109 = vmatpush1.msra.mxu0 0.0
    %110 = vmatprep.mubr.f32.mxu0 0.0
    %111 = vmatmul.mubr.f32.gmra.mrb[0].mxu0 %v44
    %v112 = vpop.f32.mrb[0].mxu0
    %v113 = vadd.f32 %v41, %v112
    %v114 = vpop.f32.mrb[0].mxu0
    %115 = vdwg.mxu0
    %v116 = vmax.f32 %v113, 0.0
    %v117 = vmin.f32 %v116, 6.0
    %vm118 = vcmask 32768
    %119 = vst.msk [vmem:[#allocation7] sm:$0x1] %vm118, %v117
    // Predicated region
    $region22: #{tpu_custom_call.1} parent=1 // pred_check
      _
    $region23: #{tpu_custom_call.1} parent=1 // pred_check_branch
      %121 = sbr.rel (0) target = $region25
    $region24: #{tpu_custom_call.1} parent=1 // pred_region
      %s123 = ssub.s32 16, 16
      %124 = vsyncadd [#allocation4], %s123
      %s126 = sshll.u32 [#allocation7], 4
      %s127 = int_to_ptr.vmem [resolvable:$true] %s126
      %129 = dma.vmem_to_hbm [thread:$0]  %s127, 16, %s3, [#allocation4]
    $region25: #{tpu_custom_call.1} parent=1 // pred_fallthru
      _
    // Predicated region
    $region26: #{tpu_custom_call.1} parent=1 // pred_check
      _
    $region27: #{tpu_custom_call.1} parent=1 // pred_check_branch
      %131 = sbr.rel (0) target = $region29
    $region28: #{tpu_custom_call.1} parent=1 // pred_region
      %132 = dma.done [#allocation4], 16
    $region29: #{tpu_custom_call.1} parent=1 // pred_fallthru
      _
    %133 = vsyncpa [#allocation3], 1
    %134 = vsyncpa [#allocation6], 1
    %135 = vsyncpa [#allocation4], 1

</llo_original>
